<compile_context>
chip_gen: v7x
topology: tpu7x:2x2x1
jax: 0.10.0
libtpu: 0.0.40
codegen_flags: <defaults>
</compile_context>

<pallas_src>
import jax
import jax.numpy as jnp
from jax import lax
from jax.experimental import pallas as pl
from jax.experimental.pallas import tpu as pltpu


# ---------------------------------------------------------------------------
# helpers
# ---------------------------------------------------------------------------
def _round_up(x, m):
    return ((x + m - 1) // m) * m


def _pick_row_tile(m, target=256):
    """Row tile: multiple of 8, <= target rows, >= 2 grid steps when possible."""
    return max(8, min(target, _round_up(-(-m // 2), 8)))


# ---------------------------------------------------------------------------
# Pallas kernels
# ---------------------------------------------------------------------------
def _fused_down_up_kernel(a_ref, wd_ref, wu_ref, o_ref):
    """contrib = relu( leaky_relu(A) @ Wd ) @ Wu   (h stays in VMEM)."""
    a = a_ref[...]                                       # (TM, 16*Cin) f32
    a = jnp.where(a >= 0, a, 0.2 * a)                    # LeakyReLU(0.2), f32 VPU
    h = jnp.dot(a.astype(jnp.bfloat16), wd_ref[...],     # bf16 MXU, f32 accum
                preferred_element_type=jnp.float32)      # (TM, inner)
    h = jnp.maximum(h, 0.0)                              # ReLU, f32
    o_ref[...] = jnp.dot(h.astype(jnp.bfloat16), wu_ref[...],
                         preferred_element_type=jnp.float32)  # (TM, 16*outer)


def fused_down_up(a, wd_mat, wu_mat, *, tm):
    """a: (Mpad, 16*Cin) f32, wd_mat: (16*Cin, inner) bf16, wu_mat: (inner, 16*outer) bf16."""
    m, kd = a.shape
    inner = wd_mat.shape[1]
    nout = wu_mat.shape[1]
    return pl.pallas_call(
        _fused_down_up_kernel,
        out_shape=jax.ShapeDtypeStruct((m, nout), jnp.float32),
        grid=(m // tm,),
        in_specs=[
            pl.BlockSpec((tm, kd), lambda i: (i, 0)),
            pl.BlockSpec((kd, inner), lambda i: (0, 0)),
            pl.BlockSpec((inner, nout), lambda i: (0, 0)),
        ],
        out_specs=pl.BlockSpec((tm, nout), lambda i: (i, 0)),
        compiler_params=pltpu.CompilerParams(dimension_semantics=("parallel",)),
    )(a, wd_mat, wu_mat)


def _bn_reduce_kernel(y_ref, s_ref, q_ref):
    """Accumulate per-channel sum and sum-of-squares across the row-tile grid."""
    @pl.when(pl.program_id(0) == 0)
    def _():
        s_ref[...] = jnp.zeros_like(s_ref)
        q_ref[...] = jnp.zeros_like(q_ref)

    x = y_ref[...]                                       # (TB, C) f32
    ones = jnp.ones((1, x.shape[0]), jnp.float32)        # row-reduce on the MXU
    s_ref[...] += jnp.dot(ones, x, preferred_element_type=jnp.float32)
    q_ref[...] += jnp.dot(ones, x * x, preferred_element_type=jnp.float32)


def _bn_apply_kernel(y_ref, sc_ref, sh_ref, o_ref):
    o_ref[...] = y_ref[...] * sc_ref[...] + sh_ref[...]


def batchnorm_train(y2d, gamma, beta, eps=1e-5):
    """Training-mode BatchNorm2d over rows of a (M, C) matrix (biased variance)."""
    m, c = y2d.shape
    tb = _pick_row_tile(m)
    m_pad = _round_up(m, tb)
    if m_pad != m:
        y2d = jnp.pad(y2d, ((0, m_pad - m), (0, 0)))     # zero rows: no effect on sums
    grid = m_pad // tb

    s, q = pl.pallas_call(
        _bn_reduce_kernel,
        out_shape=(jax.ShapeDtypeStruct((1, c), jnp.float32),
                   jax.ShapeDtypeStruct((1, c), jnp.float32)),
        grid=(grid,),
        in_specs=[pl.BlockSpec((tb, c), lambda i: (i, 0))],
        out_specs=(pl.BlockSpec((1, c), lambda i: (0, 0)),
                   pl.BlockSpec((1, c), lambda i: (0, 0))),
        compiler_params=pltpu.CompilerParams(dimension_semantics=("arbitrary",)),
    )(y2d)

    mean = s / m
    var = q / m - mean * mean                            # biased variance
    inv = lax.rsqrt(var + eps)
    scale = gamma.reshape(1, c) * inv
    shift = beta.reshape(1, c) - mean * scale

    out = pl.pallas_call(
        _bn_apply_kernel,
        out_shape=jax.ShapeDtypeStruct((m_pad, c), jnp.float32),
        grid=(grid,),
        in_specs=[pl.BlockSpec((tb, c), lambda i: (i, 0)),
                  pl.BlockSpec((1, c), lambda i: (0, 0)),
                  pl.BlockSpec((1, c), lambda i: (0, 0))],
        out_specs=pl.BlockSpec((tb, c), lambda i: (i, 0)),
        compiler_params=pltpu.CompilerParams(dimension_semantics=("parallel",)),
    )(y2d, scale, shift)
    return out[:m] if m_pad != m else out


# ---------------------------------------------------------------------------
# Forward pass (JAX glue around the Pallas kernels)
# ---------------------------------------------------------------------------
def unet_innermost_block(x_nchw, params):
    n, c_in, h_dim, w_dim = x_nchw.shape
    wd = params["down_w"]        # Conv2d weight:           (inner, C_in, 4, 4)
    wu = params["up_w"]          # ConvTranspose2d weight:  (inner, outer, 4, 4)
    gamma = params["bn_gamma"]   # BatchNorm2d weight:      (outer,)
    beta = params["bn_beta"]     # BatchNorm2d bias:        (outer,)
    inner = wd.shape[0]
    outer = wu.shape[1]
    ho, wo = h_dim // 2, w_dim // 2

    # --- im2col for Conv2d(k=4, s=2, p=1): space-to-depth + 4 shifted views.
    x_nhwc = jnp.transpose(x_nchw, (0, 2, 3, 1))
    xp = jnp.pad(x_nhwc, ((0, 0), (1, 1), (1, 1), (0, 0)))     # (N, H+2, W+2, C)
    s2d = xp.reshape(n, ho + 1, 2, wo + 1, 2, c_in)
    s2d = s2d.transpose(0, 1, 3, 2, 4, 5).reshape(n, ho + 1, wo + 1, 4 * c_in)
    # TODO(synk): this still materializes a 4x-activation im2col in HBM; a fully
    #             fused spatial kernel with manual halo DMA would remove it.
    a = jnp.concatenate(
        [s2d[:, dr:dr + ho, dc:dc + wo, :] for dr in (0, 1) for dc in (0, 1)],
        axis=-1).reshape(n * ho * wo, 16 * c_in)

    # Weight matrices (bf16 for the MXU). K order must match A's (a, b, p, q, c).
    wd_mat = (wd.transpose(2, 3, 1, 0)                   # (kh, kw, C, O)
                .reshape(2, 2, 2, 2, c_in, inner)        # (a, p, b, q, C, O)
                .transpose(0, 2, 1, 3, 4, 5)             # (a, b, p, q, C, O)
                .reshape(16 * c_in, inner).astype(jnp.bfloat16))
    wu_mat = wu.transpose(0, 2, 3, 1).reshape(inner, 16 * outer).astype(jnp.bfloat16)

    # --- fused LeakyReLU -> conv matmul -> ReLU -> convT matmul (one kernel).
    m = n * ho * wo
    tm = _pick_row_tile(m)
    m_pad = _round_up(m, tm)
    if m_pad != m:
        a = jnp.pad(a, ((0, m_pad - m), (0, 0)))
    contrib = fused_down_up(a, wd_mat, wu_mat, tm=tm)[:m]
    contrib = contrib.reshape(n, ho, wo, 4, 4, outer)    # tap axes: (kh, kw)

    # --- ConvTranspose2d(k=4, s=2, p=1) col2im in sub-pixel gather form:
    #     each output parity class (dy, dx) is a dense sum of 4 shifted slices.
    cp = jnp.pad(contrib, ((0, 0), (1, 1), (1, 1), (0, 0), (0, 0), (0, 0)))
    row_terms = {0: ((slice(1, ho + 1), 1), (slice(0, ho), 3)),
                 1: ((slice(1, ho + 1), 2), (slice(2, ho + 2), 0))}
    col_terms = {0: ((slice(1, wo + 1), 1), (slice(0, wo), 3)),
                 1: ((slice(1, wo + 1), 2), (slice(2, wo + 2), 0))}
    parity = []
    for dy in (0, 1):
        for dx in (0, 1):
            acc = None
            for rs, kh in row_terms[dy]:
                for cs, kw in col_terms[dx]:
                    t = cp[:, rs, cs, kh, kw, :]
                    acc = t if acc is None else acc + t
            parity.append(acc)                           # (N, Ho, Wo, outer)
    y = (jnp.stack(parity, axis=0).reshape(2, 2, n, ho, wo, outer)
         .transpose(2, 3, 0, 4, 1, 5).reshape(n, h_dim, w_dim, outer))

    # --- BatchNorm2d (training-mode batch statistics), tiled two-pass.
    y2d = batchnorm_train(y.reshape(n * h_dim * w_dim, outer), gamma, beta)
    y_nchw = jnp.transpose(y2d.reshape(n, h_dim, w_dim, outer), (0, 3, 1, 2))

    # TODO(synk): the NHWC->NCHW transpose + skip concat are still separate XLA
    #             passes; they could be folded into the BN-apply kernel epilogue.
    return jnp.concatenate([x_nchw, y_nchw], axis=1)     # torch.cat([x, model(x)], 1)


# ---------------------------------------------------------------------------
# Pure-JAX reference (same semantics as the PyTorch module) for verification
# ---------------------------------------------------------------------------
def reference(x, wd, wu, gamma, beta):
    lx = jnp.where(x >= 0, x, 0.2 * x)
    h = lax.conv_general_dilated(
        lx, wd, window_strides=(2, 2), padding=[(1, 1), (1, 1)],
        dimension_numbers=("NCHW", "OIHW", "NCHW"), precision=lax.Precision.HIGHEST)
    h = jnp.maximum(h, 0.0)
    y = lax.conv_general_dilated(
        h, jnp.flip(wu, (2, 3)), window_strides=(1, 1), padding=[(2, 2), (2, 2)],
        lhs_dilation=(2, 2), dimension_numbers=("NCHW", "IOHW", "NCHW"),
        precision=lax.Precision.HIGHEST)
    mean = jnp.mean(y, axis=(0, 2, 3), keepdims=True)
    var = jnp.mean((y - mean) ** 2, axis=(0, 2, 3), keepdims=True)
    yn = (y - mean) * lax.rsqrt(var + 1e-5) * gamma.reshape(1, -1, 1, 1) \
        + beta.reshape(1, -1, 1, 1)
    return jnp.concatenate([x, yn], axis=1)


if __name__ == "__main__":
    key = jax.random.PRNGKey(0)
    k1, k2, k3, k4, k5 = jax.random.split(key, 5)

    # innermost block: in_channels = outer_channels
    n, outer, inner, h, w = 2, 4, 8, 16, 16
    x = jax.random.normal(k1, (n, outer, h, w), jnp.float32)

    params = {
        "down_w": jax.random.normal(k2, (inner, outer, 4, 4), jnp.float32) * 0.05,
        "up_w":   jax.random.normal(k3, (inner, outer, 4, 4), jnp.float32) * 0.05,
        "bn_gamma": 1.0 + 0.1 * jax.random.normal(k4, (outer,), jnp.float32),
        "bn_beta":  0.1 * jax.random.normal(k5, (outer,), jnp.float32),
    }

    out = jax.jit(unet_innermost_block)(x, params)
    out = jax.block_until_ready(out)

    ref = reference(x, params["down_w"], params["up_w"],
                    params["bn_gamma"], params["bn_beta"])

    assert out.shape == (n, 2 * outer, h, w), out.shape
    max_err = float(jnp.max(jnp.abs(out - ref)))
    assert jnp.allclose(out, ref, atol=3e-2, rtol=3e-2), max_err

    print("KERNEL_OK")
</pallas_src>

<mosaic_0001>
module attributes {stable_mosaic.version = 11 : i64} {
  func.func @_fused_down_up_kernel(%arg0: i32, %arg1: memref<64x64xf32, #tpu.memory_space<vmem>>, %arg2: memref<64x8xbf16, #tpu.memory_space<vmem>>, %arg3: memref<8x64xbf16, #tpu.memory_space<vmem>>, %arg4: memref<64x64xf32, #tpu.memory_space<vmem>>) attributes {dimension_semantics = [#tpu.dimension_semantics<parallel>], iteration_bounds = array<i64: 2>, scalar_prefetch = 0 : i64, scratch_operands = 0 : i64, tpu.core_type = #tpu.core_type<tc>, window_params = [{transform_indices = @transform_0, window_bounds = array<i64: 64, 64>}, {pipeline_mode = #tpu.pipeline_mode<synchronous>, transform_indices = @transform_1, window_bounds = array<i64: 64, 8>}, {pipeline_mode = #tpu.pipeline_mode<synchronous>, transform_indices = @transform_2, window_bounds = array<i64: 8, 64>}, {transform_indices = @transform_3, window_bounds = array<i64: 64, 64>}]} {
    %c0 = arith.constant 0 : index
    %c0_0 = arith.constant 0 : index
    %0 = vector.load %arg1[%c0, %c0_0] : memref<64x64xf32, #tpu.memory_space<vmem>>, vector<64x64xf32>
    %cst = arith.constant 0.000000e+00 : f32
    %1 = vector.broadcast %cst : f32 to vector<64x64xf32>
    %2 = arith.cmpf oge, %0, %1 : vector<64x64xf32>
    %cst_1 = arith.constant 2.000000e-01 : f32
    %3 = vector.broadcast %cst_1 : f32 to vector<64x64xf32>
    %4 = arith.mulf %3, %0 : vector<64x64xf32>
    %5 = arith.select %2, %0, %4 : vector<64x64xi1>, vector<64x64xf32>
    %6 = arith.truncf %5 : vector<64x64xf32> to vector<64x64xbf16>
    %c0_2 = arith.constant 0 : index
    %c0_3 = arith.constant 0 : index
    %7 = vector.load %arg2[%c0_2, %c0_3] : memref<64x8xbf16, #tpu.memory_space<vmem>>, vector<64x8xbf16>
    %cst_4 = arith.constant dense<0.000000e+00> : vector<64x8xf32>
    %8 = tpu.matmul %6, %7, %cst_4 {dimension_numbers = #tpu.dot_dimension_numbers<[1], [0], [0], [1], [0, 0, 1, 1], [], []>} : vector<64x64xbf16>, vector<64x8xbf16>, vector<64x8xf32> -> vector<64x8xf32>
    %cst_5 = arith.constant 0.000000e+00 : f32
    %9 = vector.broadcast %cst_5 : f32 to vector<64x8xf32>
    %10 = arith.maximumf %8, %9 : vector<64x8xf32>
    %11 = arith.truncf %10 : vector<64x8xf32> to vector<64x8xbf16>
    %c0_6 = arith.constant 0 : index
    %c0_7 = arith.constant 0 : index
    %12 = vector.load %arg3[%c0_6, %c0_7] : memref<8x64xbf16, #tpu.memory_space<vmem>>, vector<8x64xbf16>
    %cst_8 = arith.constant dense<0.000000e+00> : vector<64x64xf32>
    %13 = tpu.matmul %11, %12, %cst_8 {dimension_numbers = #tpu.dot_dimension_numbers<[1], [0], [0], [1], [0, 0, 1, 1], [], []>} : vector<64x8xbf16>, vector<8x64xbf16>, vector<64x64xf32> -> vector<64x64xf32>
    %c0_9 = arith.constant 0 : index
    %c0_10 = arith.constant 0 : index
    %14 = vector.load %arg4[%c0_9, %c0_10] : memref<64x64xf32, #tpu.memory_space<vmem>>, vector<64x64xf32>
    tpu.vector_store %arg4[%c0_9, %c0_10], %13 {strides = array<i32>} : memref<64x64xf32, #tpu.memory_space<vmem>>, vector<64x64xf32>,
    return
  }
  func.func @transform_0(%arg0: i32) -> (i32, i32) {
    %c0_i32 = arith.constant 0 : i32
    %c0_i32_0 = arith.constant 0 : i32
    return %arg0, %c0_i32 : i32, i32
  }
  func.func @transform_1(%arg0: i32) -> (i32, i32) {
    %c0_i32 = arith.constant 0 : i32
    %c0_i32_0 = arith.constant 0 : i32
    %c0_i32_1 = arith.constant 0 : i32
    return %c0_i32, %c0_i32_0 : i32, i32
  }
  func.func @transform_2(%arg0: i32) -> (i32, i32) {
    %c0_i32 = arith.constant 0 : i32
    %c0_i32_0 = arith.constant 0 : i32
    %c0_i32_1 = arith.constant 0 : i32
    return %c0_i32, %c0_i32_0 : i32, i32
  }
  func.func @transform_3(%arg0: i32) -> (i32, i32) {
    %c0_i32 = arith.constant 0 : i32
    %c0_i32_0 = arith.constant 0 : i32
    return %arg0, %c0_i32 : i32, i32
  }
}

module attributes {stable_mosaic.version = 11 : i64} {
  func.func @_bn_apply_kernel(%arg0: i32, %arg1: memref<256x4xf32, #tpu.memory_space<vmem>>, %arg2: memref<1x4xf32, #tpu.memory_space<vmem>>, %arg3: memref<1x4xf32, #tpu.memory_space<vmem>>, %arg4: memref<256x4xf32, #tpu.memory_space<vmem>>) attributes {dimension_semantics = [#tpu.dimension_semantics<parallel>], iteration_bounds = array<i64: 2>, scalar_prefetch = 0 : i64, scratch_operands = 0 : i64, tpu.core_type = #tpu.core_type<tc>, window_params = [{transform_indices = @transform_0, window_bounds = array<i64: 256, 4>}, {pipeline_mode = #tpu.pipeline_mode<synchronous>, transform_indices = @transform_1, window_bounds = array<i64: 1, 4>}, {pipeline_mode = #tpu.pipeline_mode<synchronous>, transform_indices = @transform_2, window_bounds = array<i64: 1, 4>}, {transform_indices = @transform_3, window_bounds = array<i64: 256, 4>}]} {
    %c0 = arith.constant 0 : index
    %c0_0 = arith.constant 0 : index
    %0 = vector.load %arg1[%c0, %c0_0] : memref<256x4xf32, #tpu.memory_space<vmem>>, vector<256x4xf32>
    %c0_1 = arith.constant 0 : index
    %c0_2 = arith.constant 0 : index
    %1 = vector.load %arg2[%c0_1, %c0_2] : memref<1x4xf32, #tpu.memory_space<vmem>>, vector<1x4xf32>
    %2 = vector.broadcast %1 : vector<1x4xf32> to vector<256x4xf32>
    %3 = arith.mulf %0, %2 : vector<256x4xf32>
    %c0_3 = arith.constant 0 : index
    %c0_4 = arith.constant 0 : index
    %4 = vector.load %arg3[%c0_3, %c0_4] : memref<1x4xf32, #tpu.memory_space<vmem>>, vector<1x4xf32>
    %5 = vector.broadcast %4 : vector<1x4xf32> to vector<256x4xf32>
    %6 = arith.addf %3, %5 : vector<256x4xf32>
    %c0_5 = arith.constant 0 : index
    %c0_6 = arith.constant 0 : index
    %7 = vector.load %arg4[%c0_5, %c0_6] : memref<256x4xf32, #tpu.memory_space<vmem>>, vector<256x4xf32>
    tpu.vector_store %arg4[%c0_5, %c0_6], %6 {strides = array<i32>} : memref<256x4xf32, #tpu.memory_space<vmem>>, vector<256x4xf32>,
    return
  }
  func.func @transform_0(%arg0: i32) -> (i32, i32) {
    %c0_i32 = arith.constant 0 : i32
    %c0_i32_0 = arith.constant 0 : i32
    return %arg0, %c0_i32 : i32, i32
  }
  func.func @transform_1(%arg0: i32) -> (i32, i32) {
    %c0_i32 = arith.constant 0 : i32
    %c0_i32_0 = arith.constant 0 : i32
    %c0_i32_1 = arith.constant 0 : i32
    return %c0_i32, %c0_i32_0 : i32, i32
  }
  func.func @transform_2(%arg0: i32) -> (i32, i32) {
    %c0_i32 = arith.constant 0 : i32
    %c0_i32_0 = arith.constant 0 : i32
    %c0_i32_1 = arith.constant 0 : i32
    return %c0_i32, %c0_i32_0 : i32, i32
  }
  func.func @transform_3(%arg0: i32) -> (i32, i32) {
    %c0_i32 = arith.constant 0 : i32
    %c0_i32_0 = arith.constant 0 : i32
    return %arg0, %c0_i32 : i32, i32
  }
}

module attributes {stable_mosaic.version = 11 : i64} {
  func.func @_bn_reduce_kernel(%arg0: i32, %arg1: memref<256x4xf32, #tpu.memory_space<vmem>>, %arg2: memref<1x4xf32, #tpu.memory_space<vmem>>, %arg3: memref<1x4xf32, #tpu.memory_space<vmem>>) attributes {dimension_semantics = [#tpu.dimension_semantics<arbitrary>], iteration_bounds = array<i64: 2>, scalar_prefetch = 0 : i64, scratch_operands = 0 : i64, tpu.core_type = #tpu.core_type<tc>, window_params = [{transform_indices = @transform_0, window_bounds = array<i64: 256, 4>}, {pipeline_mode = #tpu.pipeline_mode<synchronous>, transform_indices = @transform_1, window_bounds = array<i64: 1, 4>}, {pipeline_mode = #tpu.pipeline_mode<synchronous>, transform_indices = @transform_2, window_bounds = array<i64: 1, 4>}]} {
    %c0_i32 = arith.constant 0 : i32
    %0 = arith.cmpi eq, %arg0, %c0_i32 : i32
    %1 = arith.extui %0 : i1 to i32
    %c0_i32_0 = arith.constant 0 : i32
    %2 = arith.cmpi ne, %1, %c0_i32_0 : i32
    scf.if %2 {
      %cst_12 = arith.constant 0.000000e+00 : f32
      %14 = vector.broadcast %cst_12 : f32 to vector<1x4xf32>
      %c0_13 = arith.constant 0 : index
      %c0_14 = arith.constant 0 : index
      %15 = vector.load %arg2[%c0_13, %c0_14] : memref<1x4xf32, #tpu.memory_space<vmem>>, vector<1x4xf32>
      tpu.vector_store %arg2[%c0_13, %c0_14], %14 {strides = array<i32>} : memref<1x4xf32, #tpu.memory_space<vmem>>, vector<1x4xf32>,
      %cst_15 = arith.constant 0.000000e+00 : f32
      %16 = vector.broadcast %cst_15 : f32 to vector<1x4xf32>
      %c0_16 = arith.constant 0 : index
      %c0_17 = arith.constant 0 : index
      %17 = vector.load %arg3[%c0_16, %c0_17] : memref<1x4xf32, #tpu.memory_space<vmem>>, vector<1x4xf32>
      tpu.vector_store %arg3[%c0_16, %c0_17], %16 {strides = array<i32>} : memref<1x4xf32, #tpu.memory_space<vmem>>, vector<1x4xf32>,
    } else {
    }
    %c0 = arith.constant 0 : index
    %c0_1 = arith.constant 0 : index
    %3 = vector.load %arg1[%c0, %c0_1] : memref<256x4xf32, #tpu.memory_space<vmem>>, vector<256x4xf32>
    %cst = arith.constant 1.000000e+00 : f32
    %4 = vector.broadcast %cst : f32 to vector<1x256xf32>
    %c0_2 = arith.constant 0 : index
    %c0_3 = arith.constant 0 : index
    %5 = vector.load %arg2[%c0_2, %c0_3] : memref<1x4xf32, #tpu.memory_space<vmem>>, vector<1x4xf32>
    %cst_4 = arith.constant dense<0.000000e+00> : vector<1x4xf32>
    %6 = tpu.matmul %4, %3, %cst_4 {dimension_numbers = #tpu.dot_dimension_numbers<[1], [0], [0], [1], [0, 0, 1, 1], [], []>} : vector<1x256xf32>, vector<256x4xf32>, vector<1x4xf32> -> vector<1x4xf32>
    %7 = arith.addf %5, %6 : vector<1x4xf32>
    %c0_5 = arith.constant 0 : index
    %c0_6 = arith.constant 0 : index
    %8 = vector.load %arg2[%c0_5, %c0_6] : memref<1x4xf32, #tpu.memory_space<vmem>>, vector<1x4xf32>
    tpu.vector_store %arg2[%c0_5, %c0_6], %7 {strides = array<i32>} : memref<1x4xf32, #tpu.memory_space<vmem>>, vector<1x4xf32>,
    %c0_7 = arith.constant 0 : index
    %c0_8 = arith.constant 0 : index
    %9 = vector.load %arg3[%c0_7, %c0_8] : memref<1x4xf32, #tpu.memory_space<vmem>>, vector<1x4xf32>
    %10 = arith.mulf %3, %3 : vector<256x4xf32>
    %cst_9 = arith.constant dense<0.000000e+00> : vector<1x4xf32>
    %11 = tpu.matmul %4, %10, %cst_9 {dimension_numbers = #tpu.dot_dimension_numbers<[1], [0], [0], [1], [0, 0, 1, 1], [], []>} : vector<1x256xf32>, vector<256x4xf32>, vector<1x4xf32> -> vector<1x4xf32>
    %12 = arith.addf %9, %11 : vector<1x4xf32>
    %c0_10 = arith.constant 0 : index
    %c0_11 = arith.constant 0 : index
    %13 = vector.load %arg3[%c0_10, %c0_11] : memref<1x4xf32, #tpu.memory_space<vmem>>, vector<1x4xf32>
    tpu.vector_store %arg3[%c0_10, %c0_11], %12 {strides = array<i32>} : memref<1x4xf32, #tpu.memory_space<vmem>>, vector<1x4xf32>,
    return
  }
  func.func @transform_0(%arg0: i32) -> (i32, i32) {
    %c0_i32 = arith.constant 0 : i32
    %c0_i32_0 = arith.constant 0 : i32
    return %arg0, %c0_i32 : i32, i32
  }
  func.func @transform_1(%arg0: i32) -> (i32, i32) {
    %c0_i32 = arith.constant 0 : i32
    %c0_i32_0 = arith.constant 0 : i32
    %c0_i32_1 = arith.constant 0 : i32
    return %c0_i32, %c0_i32_0 : i32, i32
  }
  func.func @transform_2(%arg0: i32) -> (i32, i32) {
    %c0_i32 = arith.constant 0 : i32
    %c0_i32_0 = arith.constant 0 : i32
    %c0_i32_1 = arith.constant 0 : i32
    return %c0_i32, %c0_i32_0 : i32, i32
  }
}

</mosaic_0001>

<llo_original>
// kernel: unet_innermost_block.3
$region0: #{unet_innermost_block.3}
  #allocation0 [shape = 'u32[]', space=smem, size = 0x4, offset = 0x4, fixed_abs, tag = 'smem constant byte address 0x4 - core index']
  #allocation1 [shape = 'u32[144,128]{1,0:T(1,128)}', space=vmem, size = 0x12000, scoped, tag = 'internal scratch']
  %s0 = inlined_call_operand.vmem [shape: f32[128,64], index: 0, kind: input, shape index: {}]
  %s1 = inlined_call_operand.vmem [shape: bf16[64,8], index: 1, kind: input, shape index: {}]
  %s2 = inlined_call_operand.vmem [shape: bf16[8,64], index: 2, kind: input, shape index: {}]
  %s3 = inlined_call_operand.vmem [shape: f32[128,64], index: 3, kind: output, shape index: {}]
  %s4 = sld [smem:[#allocation0]]
  $region45: #{unet_innermost_block.3} parent=0
    _
  %s6 = ssub.s32 1, %s4
  %s7 = scalar_select 0, %s6, %s4
  loop: start=0, step=1, limit=4
  $region2: #{unet_innermost_block.3} parent=0 // loop_pre_header
    _
  $region3: #{unet_innermost_block.3} parent=0 // loop_header
    %s9 = sphi 0, %s13
    %p10 = scmp.ge.s32.totalorder %s9, 4
    %s19 = sphi 0, %s21
    %s22 = sphi 0, %s19
    %s23 = sphi 0, %s22
    %s39 = sphi 0, %s23
    %s43 = sphi 0, %s43
    %s45 = sphi 0, %s43
    %s46 = sphi 0, %s45
    %s60 = sphi 0, %s46
    %s64 = sphi 0, %s64
    %s66 = sphi 0, %s64
    %s67 = sphi 0, %s66
    %s81 = sphi 0, %s67
    %s87 = sphi 0, %s89
    %s90 = sphi 0, %s87
    %s91 = sphi 0, %s90
    %s107 = sphi 0, %s91
  $region4: #{unet_innermost_block.3} parent=0 // loop_header_branch
    %12 = sbr.rel (%p10) target = $region8
  $region5: #{unet_innermost_block.3} parent=0 // loop_body
    %s14 = ssub.s32 %s9, 1
    %s15 = ssub.s32 %s9, 2
    %s16 = sadd.s32 %s9, 1
    %s17 = ssub.s32 %s9, %s16
    %p18 = scmp.eq.s32.totalorder %s17, 0
    %s20 = sadd.s32 %s19, 1
    %s21 = scalar_select %p18, %s19, %s20
    %p24 = pneg %p18
    %p25 = scmp.eq.s32.totalorder %s9, 1
    %p26 = por %p24, %p25
    %p27 = scmp.ne.s32.totalorder %s19, %s22
    %p28 = scmp.eq.s32.totalorder %s9, 0
    %p29 = por %p27, %p28
    %p30 = scmp.ne.s32.totalorder %s19, %s22
    %p31 = scmp.eq.s32.totalorder %s14, 1
    %p32 = por %p30, %p31
    %p33 = scmp.ne.s32.totalorder %s22, %s23
    %p34 = scmp.eq.s32.totalorder %s14, 0
    %p35 = por %p33, %p34
    %p36 = scmp.ne.s32.totalorder %s22, %s23
    %p37 = scmp.eq.s32.totalorder %s15, 1
    %p38 = por %p36, %p37
    %p40 = scmp.ne.s32.totalorder %s23, %s39
    %p41 = scmp.eq.s32.totalorder %s15, 0
    %p42 = por %p40, %p41
    %s44 = sadd.s32 %s43, 1
    %p47 = scmp.eq.s32.totalorder %s9, 1
    %p48 = scmp.ne.s32.totalorder %s43, %s45
    %p49 = scmp.eq.s32.totalorder %s9, 0
    %p50 = por %p48, %p49
    %p51 = scmp.ne.s32.totalorder %s43, %s45
    %p52 = scmp.eq.s32.totalorder %s14, 1
    %p53 = por %p51, %p52
    %p54 = scmp.ne.s32.totalorder %s45, %s46
    %p55 = scmp.eq.s32.totalorder %s14, 0
    %p56 = por %p54, %p55
    %p57 = scmp.ne.s32.totalorder %s45, %s46
    %p58 = scmp.eq.s32.totalorder %s15, 1
    %p59 = por %p57, %p58
    %p61 = scmp.ne.s32.totalorder %s46, %s60
    %p62 = scmp.eq.s32.totalorder %s15, 0
    %p63 = por %p61, %p62
    %s65 = sadd.s32 %s64, 1
    %p68 = scmp.eq.s32.totalorder %s9, 1
    %p69 = scmp.ne.s32.totalorder %s64, %s66
    %p70 = scmp.eq.s32.totalorder %s9, 0
    %p71 = por %p69, %p70
    %p72 = scmp.ne.s32.totalorder %s64, %s66
    %p73 = scmp.eq.s32.totalorder %s14, 1
    %p74 = por %p72, %p73
    %p75 = scmp.ne.s32.totalorder %s66, %s67
    %p76 = scmp.eq.s32.totalorder %s14, 0
    %p77 = por %p75, %p76
    %p78 = scmp.ne.s32.totalorder %s66, %s67
    %p79 = scmp.eq.s32.totalorder %s15, 1
    %p80 = por %p78, %p79
    %p82 = scmp.ne.s32.totalorder %s67, %s81
    %p83 = scmp.eq.s32.totalorder %s15, 0
    %p84 = por %p82, %p83
    %s85 = ssub.s32 %s9, %s16
    %p86 = scmp.eq.s32.totalorder %s85, 0
    %s88 = sadd.s32 %s87, 1
    %s89 = scalar_select %p86, %s87, %s88
    %p92 = pneg %p86
    %p93 = scmp.eq.s32.totalorder %s9, 1
    %p94 = por %p92, %p93
    %p95 = scmp.ne.s32.totalorder %s87, %s90
    %p96 = scmp.eq.s32.totalorder %s9, 0
    %p97 = por %p95, %p96
    %p98 = scmp.ne.s32.totalorder %s87, %s90
    %p99 = scmp.eq.s32.totalorder %s14, 1
    %p100 = por %p98, %p99
    %p101 = scmp.ne.s32.totalorder %s90, %s91
    %p102 = scmp.eq.s32.totalorder %s14, 0
    %p103 = por %p101, %p102
    %p104 = scmp.ne.s32.totalorder %s90, %s91
    %p105 = scmp.eq.s32.totalorder %s15, 1
    %p106 = por %p104, %p105
    %p108 = scmp.ne.s32.totalorder %s91, %s107
    %p109 = scmp.eq.s32.totalorder %s15, 0
    %p110 = por %p108, %p109
    %p111 = scmp.le.s32.totalorder 1, %s9
    %p112 = scmp.lt.s32.totalorder %s9, 3
    %p113 = pnand %p111, %p112
    %p114 = pneg %p113
    // Predicated region
    $region9: #{unet_innermost_block.3} parent=5 // pred_check
      _
    $region10: #{unet_innermost_block.3} parent=5 // pred_check_branch
      %116 = sbr.rel (%p113) target = $region12
    $region11: #{unet_innermost_block.3} parent=5 // pred_region
      %s117 = ssub.s32 %s9, 1
      // Predicated region
      $region13: #{unet_innermost_block.3} parent=11 // pred_check
        %p118 = pneg %p56
      $region14: #{unet_innermost_block.3} parent=11 // pred_check_branch
        %120 = sbr.rel (%p118) target = $region16
      $region15: #{unet_innermost_block.3} parent=11 // pred_region
        _
      $region16: #{unet_innermost_block.3} parent=11 // pred_fallthru
        _
      // Predicated region
      $region17: #{unet_innermost_block.3} parent=11 // pred_check
        %p121 = pneg %p77
      $region18: #{unet_innermost_block.3} parent=11 // pred_check_branch
        %123 = sbr.rel (%p121) target = $region20
      $region19: #{unet_innermost_block.3} parent=11 // pred_region
        _
      $region20: #{unet_innermost_block.3} parent=11 // pred_fallthru
        _
    $region12: #{unet_innermost_block.3} parent=5 // pred_fallthru
      _
    %p124 = scmp.lt.s32.totalorder %s9, 2
    // Predicated region
    $region21: #{unet_innermost_block.3} parent=5 // pred_check
      %p125 = pneg %p124
    $region22: #{unet_innermost_block.3} parent=5 // pred_check_branch
      %127 = sbr.rel (%p125) target = $region24
    $region23: #{unet_innermost_block.3} parent=5 // pred_region
      // Predicated region
      $region25: #{unet_innermost_block.3} parent=23 // pred_check
        %p128 = pneg %p29
      $region26: #{unet_innermost_block.3} parent=23 // pred_check_branch
        %130 = sbr.rel (%p128) target = $region28
      $region27: #{unet_innermost_block.3} parent=23 // pred_region
        %s131 = smul.u32 8, %s9
        %p132 = scmp.lt.s32.totalorder %s131, 15
        %s133 = scalar_select %p132, %s131, 15
        %s134 = smul.addr %s133, 8
        %s135 = scalar_lea.vmem %s0, %s134
        %s136 = smul.u32 8, %s9
      $region28: #{unet_innermost_block.3} parent=23 // pred_fallthru
        _
    $region24: #{unet_innermost_block.3} parent=5 // pred_fallthru
      _
    %p137 = scmp.le.s32.totalorder 1, %s9
    %p138 = scmp.lt.s32.totalorder %s9, 3
    %p139 = pnand %p137, %p138
    %p140 = pneg %p139
    // Predicated region
    $region29: #{unet_innermost_block.3} parent=5 // pred_check
      _
    $region30: #{unet_innermost_block.3} parent=5 // pred_check_branch
      %142 = sbr.rel (%p139) target = $region32
    $region31: #{unet_innermost_block.3} parent=5 // pred_region
      %s143 = ssub.s32 %s9, 1
      %s144 = smul.u32 8, %s14
      %p145 = scmp.lt.s32.totalorder %s144, 15
      %s146 = scalar_select %p145, %s144, 15
      %s147 = smul.addr %s146, 8
      %s148 = scalar_lea.vmem %s0, %s147
      %p149 = pneg %p35
      %p150 = pneg %p32
      %p151 = pneg %p56
      %p152 = pneg %p53
      %p153 = pneg %p77
      %p154 = pneg %p74
      %p155 = pneg %p103
      %p156 = pneg %p100
      %s157 = smul.u32 8, %s14
      %p158 = scmp.lt.s32.totalorder %s157, 15
      %s159 = scalar_select %p158, %s157, 15
      %s160 = smul.addr %s159, 8
      %s161 = scalar_lea.vmem %s3, %s160
      %s162 = smul.u32 8, %s14
      %p163 = scmp.lt.s32.totalorder %s162, 15
      %s164 = scalar_select %p163, %s162, 15
      %s165 = smul.addr %s164, 8
      %s166 = scalar_lea.vmem %s0, %s165
      %s167 = smul.u32 8, %s14
      %s168 = smul.u32 8, %s14
      %p169 = scmp.lt.s32.totalorder %s168, 15
      %s170 = scalar_select %p169, %s168, 15
      %s171 = smul.addr %s170, 8
      %s172 = scalar_lea.vmem %s3, %s171
      %s173 = smul.u32 8, %s14
      %v175 = vld [vmem:[%s166] sm:$0xff]
      %v176 = vld [vmem:[%s166 + $0x8] sm:$0xff]
      %v177 = vld [vmem:[%s166 + $0x10] sm:$0xff]
      %v178 = vld [vmem:[%s166 + $0x18] sm:$0xff]
      %v179 = vld [vmem:[%s166 + $0x20] sm:$0xff]
      %v180 = vld [vmem:[%s166 + $0x28] sm:$0xff]
      %v181 = vld [vmem:[%s166 + $0x30] sm:$0xff]
      %v182 = vld [vmem:[%s166 + $0x38] sm:$0xff]
      %vm183 = vcmp.ge.f32.partialorder %v175, 0.0
      %vm184 = vcmp.ge.f32.partialorder %v176, 0.0
      %vm185 = vcmp.ge.f32.partialorder %v177, 0.0
      %vm186 = vcmp.ge.f32.partialorder %v178, 0.0
      %vm187 = vcmp.ge.f32.partialorder %v179, 0.0
      %vm188 = vcmp.ge.f32.partialorder %v180, 0.0
      %vm189 = vcmp.ge.f32.partialorder %v181, 0.0
      %vm190 = vcmp.ge.f32.partialorder %v182, 0.0
      %v191 = vmul.f32 %v175, 0.2
      %v192 = vmul.f32 %v176, 0.2
      %v193 = vmul.f32 %v177, 0.2
      %v194 = vmul.f32 %v178, 0.2
      %v195 = vmul.f32 %v179, 0.2
      %v196 = vmul.f32 %v180, 0.2
      %v197 = vmul.f32 %v181, 0.2
      %v198 = vmul.f32 %v182, 0.2
      %v199 = vsel %vm183, %v175, %v191
      %v200 = vsel %vm184, %v176, %v192
      %v201 = vsel %vm185, %v177, %v193
      %v202 = vsel %vm186, %v178, %v194
      %v203 = vsel %vm187, %v179, %v195
      %v204 = vsel %vm188, %v180, %v196
      %v205 = vsel %vm189, %v181, %v197
      %v206 = vsel %vm190, %v182, %v198
      %v207 = vpack.c.bf16 %v200, %v199
      %v208 = vpack.c.bf16 %v202, %v201
      %v209 = vpack.c.bf16 %v204, %v203
      %v210 = vpack.c.bf16 %v206, %v205
      %v211 = vld [vmem:[%s1] sm:$0xf]
      %v212 = vld [vmem:[%s1 + $0x4] sm:$0xf]
      %v213 = vld [vmem:[%s1 + $0x8] sm:$0xf]
      %v214 = vld [vmem:[%s1 + $0xc] sm:$0xf]
      %v215 = vld [vmem:[%s1 + $0x10] sm:$0xf]
      %v216 = vld [vmem:[%s1 + $0x14] sm:$0xf]
      %v217 = vld [vmem:[%s1 + $0x18] sm:$0xf]
      %v218 = vld [vmem:[%s1 + $0x1c] sm:$0xf]
      %v227 = vunpack.c.l.b16 %v211
      %v228 = vunpack.c.l.b16 %v212
      %v229 = vunpack.c.l.b16 %v213
      %v230 = vunpack.c.l.b16 %v214
      %v231 = vunpack.c.l.b16 %v215
      %v232 = vunpack.c.l.b16 %v216
      %v233 = vunpack.c.l.b16 %v217
      %v234 = vunpack.c.l.b16 %v218
      %v235 = vpack.c.b16 %v228, %v227
      %v236 = vpack.c.b16 %v230, %v229
      %v237 = vpack.c.b16 %v232, %v231
      %v238 = vpack.c.b16 %v234, %v233
      %vm243 = vcmask 523264
      %v245 = vsel %vm243, %v207, 0
      %v248 = vsel %vm243, %v208, 0
      %v251 = vsel %vm243, %v209, 0
      %v254 = vsel %vm243, %v210, 0
      %256 = vmatprep.subr.bf16.mxu0 0
      %257 = vmatpush1.bf16.msra.mxu0 %v235
      %258 = vmatprep.subr.bf16.mxu0 0
      %259 = vmatpush1.bf16.msra.mxu0 %v236
      %260 = vmatprep.subr.bf16.mxu0 0
      %261 = vmatpush1.bf16.msra.mxu0 %v237
      %262 = vmatprep.subr.bf16.mxu0 0
      %263 = vmatpush1.bf16.msra.mxu0 %v238
      %264 = vmatprep.subr.bf16.mxu0 0
      %265 = vmatpush1.bf16.msra.mxu0 0
      %266 = vmatprep.subr.bf16.mxu0 0
      %267 = vmatpush1.bf16.msra.mxu0 0
      %268 = vmatprep.subr.bf16.mxu0 0
      %269 = vmatpush1.bf16.msra.mxu0 0
      %270 = vmatprep.subr.bf16.mxu0 0
      %271 = vmatpush1.bf16.msra.mxu0 0
      %272 = vmatprep.subr.bf16.mxu0 0
      %273 = vmatpush1.bf16.msra.mxu0 0
      %274 = vmatprep.subr.bf16.mxu0 0
      %275 = vmatpush1.bf16.msra.mxu0 0
      %276 = vmatprep.subr.bf16.mxu0 0
      %277 = vmatpush1.bf16.msra.mxu0 0
      %278 = vmatprep.subr.bf16.mxu0 0
      %279 = vmatpush1.bf16.msra.mxu0 0
      %280 = vmatprep.subr.bf16.mxu0 0
      %281 = vmatpush1.bf16.msra.mxu0 0
      %282 = vmatprep.subr.bf16.mxu0 0
      %283 = vmatpush1.bf16.msra.mxu0 0
      %284 = vmatprep.subr.bf16.mxu0 0
      %285 = vmatpush1.bf16.msra.mxu0 0
      %286 = vmatprep.subr.bf16.mxu0 0
      %287 = vmatpush1.bf16.msra.mxu0 0
      %288 = vmatprep.mubr.bf16.mxu0 0
      %289 = vmatmul.mubr.bf16.gmra.mrb[0].mxu0 %v245
      %v290 = vpop.f32.mrb[0].mxu0
      %v291 = vadd.f32 0.0, %v290
      %v292 = vpop.f32.mrb[0].mxu0
      %v293 = vpop.f32.mrb[0].mxu0
      %v294 = vadd.f32 0.0, %v293
      %v295 = vpop.f32.mrb[0].mxu0
      %296 = vmatprep.mubr.bf16.mxu0 0
      %297 = vmatmul.mubr.bf16.gmra.mrb[0].mxu0 %v248
      %v298 = vpop.f32.mrb[0].mxu0
      %v299 = vadd.f32 0.0, %v298
      %v300 = vpop.f32.mrb[0].mxu0
      %v301 = vpop.f32.mrb[0].mxu0
      %v302 = vadd.f32 0.0, %v301
      %v303 = vpop.f32.mrb[0].mxu0
      %304 = vmatprep.mubr.bf16.mxu0 0
      %305 = vmatmul.mubr.bf16.gmra.mrb[0].mxu0 %v251
      %v306 = vpop.f32.mrb[0].mxu0
      %v307 = vadd.f32 0.0, %v306
      %v308 = vpop.f32.mrb[0].mxu0
      %v309 = vpop.f32.mrb[0].mxu0
      %v310 = vadd.f32 0.0, %v309
      %v311 = vpop.f32.mrb[0].mxu0
      %312 = vmatprep.mubr.bf16.mxu0 0
      %313 = vmatmul.mubr.bf16.gmra.mrb[0].mxu0 %v254
      %v314 = vpop.f32.mrb[0].mxu0
      %v315 = vadd.f32 0.0, %v314
      %v316 = vpop.f32.mrb[0].mxu0
      %v317 = vpop.f32.mrb[0].mxu0
      %v318 = vadd.f32 0.0, %v317
      %v319 = vpop.f32.mrb[0].mxu0
      %320 = vdwg.mxu0
      %v321 = vmax.f32 %v291, 0.0
      %v322 = vmax.f32 %v294, 0.0
      %v323 = vmax.f32 %v299, 0.0
      %v324 = vmax.f32 %v302, 0.0
      %v325 = vmax.f32 %v307, 0.0
      %v326 = vmax.f32 %v310, 0.0
      %v327 = vmax.f32 %v315, 0.0
      %v328 = vmax.f32 %v318, 0.0
      %v329 = vpack.c.bf16 %v322, %v321
      %v330 = vpack.c.bf16 %v324, %v323
      %v331 = vpack.c.bf16 %v326, %v325
      %v332 = vpack.c.bf16 %v328, %v327
      %v333 = vld [vmem:[%s2] sm:$0xf]
      %vm334 = vcmask 64512
      %v336 = vsel %vm334, %v329, 0
      %v339 = vsel %vm334, %v330, 0
      %v342 = vsel %vm334, %v331, 0
      %v345 = vsel %vm334, %v332, 0
      %vm347 = vcmask 1043456
      %v349 = vsel %vm347, %v333, 0
      %351 = vmatprep.subr.bf16.mxu0 0
      %352 = vmatpush1.bf16.msra.mxu0 %v349
      %353 = vmatprep.subr.bf16.mxu0 0
      %354 = vmatpush1.bf16.msra.mxu0 0
      %355 = vmatprep.subr.bf16.mxu0 0
      %356 = vmatpush1.bf16.msra.mxu0 0
      %357 = vmatprep.subr.bf16.mxu0 0
      %358 = vmatpush1.bf16.msra.mxu0 0
      %359 = vmatprep.subr.bf16.mxu0 0
      %360 = vmatpush1.bf16.msra.mxu0 0
      %361 = vmatprep.subr.bf16.mxu0 0
      %362 = vmatpush1.bf16.msra.mxu0 0
      %363 = vmatprep.subr.bf16.mxu0 0
      %364 = vmatpush1.bf16.msra.mxu0 0
      %365 = vmatprep.subr.bf16.mxu0 0
      %366 = vmatpush1.bf16.msra.mxu0 0
      %367 = vmatprep.subr.bf16.mxu0 0
      %368 = vmatpush1.bf16.msra.mxu0 0
      %369 = vmatprep.subr.bf16.mxu0 0
      %370 = vmatpush1.bf16.msra.mxu0 0
      %371 = vmatprep.subr.bf16.mxu0 0
      %372 = vmatpush1.bf16.msra.mxu0 0
      %373 = vmatprep.subr.bf16.mxu0 0
      %374 = vmatpush1.bf16.msra.mxu0 0
      %375 = vmatprep.subr.bf16.mxu0 0
      %376 = vmatpush1.bf16.msra.mxu0 0
      %377 = vmatprep.subr.bf16.mxu0 0
      %378 = vmatpush1.bf16.msra.mxu0 0
      %379 = vmatprep.subr.bf16.mxu0 0
      %380 = vmatpush1.bf16.msra.mxu0 0
      %381 = vmatprep.subr.bf16.mxu0 0
      %382 = vmatpush1.bf16.msra.mxu0 0
      %383 = vmatprep.mubr.bf16.mxu0 0
      %384 = vmatmul.mubr.bf16.gmra.mrb[0].mxu0 %v336
      %v385 = vpop.f32.mrb[0].mxu0
      %v386 = vadd.f32 0.0, %v385
      %v387 = vpop.f32.mrb[0].mxu0
      %v388 = vpop.f32.mrb[0].mxu0
      %v389 = vadd.f32 0.0, %v388
      %v390 = vpop.f32.mrb[0].mxu0
      %391 = vmatprep.mubr.bf16.mxu0 0
      %392 = vmatmul.mubr.bf16.gmra.mrb[0].mxu0 %v339
      %v393 = vpop.f32.mrb[0].mxu0
      %v394 = vadd.f32 0.0, %v393
      %v395 = vpop.f32.mrb[0].mxu0
      %v396 = vpop.f32.mrb[0].mxu0
      %v397 = vadd.f32 0.0, %v396
      %v398 = vpop.f32.mrb[0].mxu0
      %399 = vmatprep.mubr.bf16.mxu0 0
      %400 = vmatmul.mubr.bf16.gmra.mrb[0].mxu0 %v342
      %v401 = vpop.f32.mrb[0].mxu0
      %v402 = vadd.f32 0.0, %v401
      %v403 = vpop.f32.mrb[0].mxu0
      %v404 = vpop.f32.mrb[0].mxu0
      %v405 = vadd.f32 0.0, %v404
      %v406 = vpop.f32.mrb[0].mxu0
      %407 = vmatprep.mubr.bf16.mxu0 0
      %408 = vmatmul.mubr.bf16.gmra.mrb[0].mxu0 %v345
      %v409 = vpop.f32.mrb[0].mxu0
      %v410 = vadd.f32 0.0, %v409
      %v411 = vpop.f32.mrb[0].mxu0
      %v412 = vpop.f32.mrb[0].mxu0
      %v413 = vadd.f32 0.0, %v412
      %v414 = vpop.f32.mrb[0].mxu0
      %415 = vdwg.mxu0
      %416 = vst.msk [vmem:[%s172] sm:$0xff] %vm243, %v386
      %417 = vst.msk [vmem:[%s172 + $0x8] sm:$0xff] %vm243, %v389
      %418 = vst.msk [vmem:[%s172 + $0x10] sm:$0xff] %vm243, %v394
      %419 = vst.msk [vmem:[%s172 + $0x18] sm:$0xff] %vm243, %v397
      %420 = vst.msk [vmem:[%s172 + $0x20] sm:$0xff] %vm243, %v402
      %421 = vst.msk [vmem:[%s172 + $0x28] sm:$0xff] %vm243, %v405
      %422 = vst.msk [vmem:[%s172 + $0x30] sm:$0xff] %vm243, %v410
      %423 = vst.msk [vmem:[%s172 + $0x38] sm:$0xff] %vm243, %v413
      %s424 = smul.u32 8, %s14
      %p425 = scmp.lt.s32.totalorder %s424, 15
      %s426 = scalar_select %p425, %s424, 15
      %s427 = smul.addr %s426, 8
      %s428 = scalar_lea.vmem %s3, %s427
      // Predicated region
      $region33: #{unet_innermost_block.3} parent=31 // pred_check
        %p429 = pneg %p100
      $region34: #{unet_innermost_block.3} parent=31 // pred_check_branch
        %431 = sbr.rel (%p429) target = $region36
      $region35: #{unet_innermost_block.3} parent=31 // pred_region
        %s432 = smul.u32 8, %s14
      $region36: #{unet_innermost_block.3} parent=31 // pred_fallthru
        _
    $region32: #{unet_innermost_block.3} parent=5 // pred_fallthru
      _
    %p433 = scmp.le.s32.totalorder 2, %s9
    // Predicated region
    $region37: #{unet_innermost_block.3} parent=5 // pred_check
      %p434 = pneg %p433
    $region38: #{unet_innermost_block.3} parent=5 // pred_check_branch
      %436 = sbr.rel (%p434) target = $region40
    $region39: #{unet_innermost_block.3} parent=5 // pred_region
      %s437 = ssub.s32 %s9, 2
      // Predicated region
      $region41: #{unet_innermost_block.3} parent=39 // pred_check
        %p438 = pneg %p106
      $region42: #{unet_innermost_block.3} parent=39 // pred_check_branch
        %440 = sbr.rel (%p438) target = $region44
      $region43: #{unet_innermost_block.3} parent=39 // pred_region
        %s441 = smul.u32 8, %s15
        %p442 = scmp.lt.s32.totalorder %s441, 15
        %s443 = scalar_select %p442, %s441, 15
        %s444 = smul.addr %s443, 8
        %s445 = scalar_lea.vmem %s3, %s444
      $region44: #{unet_innermost_block.3} parent=39 // pred_fallthru
        _
    $region40: #{unet_innermost_block.3} parent=5 // pred_fallthru
      _
  $region6: #{unet_innermost_block.3} parent=0 // loop_footer
    %s13 = sadd.s32 1, %s9
  $region7: #{unet_innermost_block.3} parent=0 // loop_footer_branch
    %8 = sbr.rel target = $region3
  $region8: #{unet_innermost_block.3} parent=0 // loop_exit
    _

// kernel: unet_innermost_block.5
$region0: #{unet_innermost_block.5}
  #allocation0 [shape = 'u32[]', space=smem, size = 0x4, offset = 0x4, fixed_abs, tag = 'smem constant byte address 0x4 - core index']
  #allocation1 [shape = 'u32[144,128]{1,0:T(1,128)}', space=vmem, size = 0x12000, scoped, tag = 'internal scratch']
  %s0 = inlined_call_operand.vmem [shape: f32[512,4], index: 0, kind: input, shape index: {}]
  %s1 = inlined_call_operand.vmem [shape: f32[1,4], index: 1, kind: input, shape index: {}]
  %s2 = inlined_call_operand.vmem [shape: f32[1,4], index: 2, kind: input, shape index: {}]
  %s3 = inlined_call_operand.vmem [shape: f32[512,4], index: 3, kind: output, shape index: {}]
  %s4 = sld [smem:[#allocation0]]
  $region45: #{unet_innermost_block.5} parent=0
    _
  %s6 = ssub.s32 1, %s4
  %s7 = scalar_select 0, %s6, %s4
  loop: start=0, step=1, limit=4
  $region2: #{unet_innermost_block.5} parent=0 // loop_pre_header
    _
  $region3: #{unet_innermost_block.5} parent=0 // loop_header
    %s9 = sphi 0, %s13
    %p10 = scmp.ge.s32.totalorder %s9, 4
    %s19 = sphi 0, %s21
    %s22 = sphi 0, %s19
    %s23 = sphi 0, %s22
    %s39 = sphi 0, %s23
    %s43 = sphi 0, %s43
    %s45 = sphi 0, %s43
    %s46 = sphi 0, %s45
    %s60 = sphi 0, %s46
    %s64 = sphi 0, %s64
    %s66 = sphi 0, %s64
    %s67 = sphi 0, %s66
    %s81 = sphi 0, %s67
    %s87 = sphi 0, %s89
    %s90 = sphi 0, %s87
    %s91 = sphi 0, %s90
    %s107 = sphi 0, %s91
  $region4: #{unet_innermost_block.5} parent=0 // loop_header_branch
    %12 = sbr.rel (%p10) target = $region8
  $region5: #{unet_innermost_block.5} parent=0 // loop_body
    %s14 = ssub.s32 %s9, 1
    %s15 = ssub.s32 %s9, 2
    %s16 = sadd.s32 %s9, 1
    %s17 = ssub.s32 %s9, %s16
    %p18 = scmp.eq.s32.totalorder %s17, 0
    %s20 = sadd.s32 %s19, 1
    %s21 = scalar_select %p18, %s19, %s20
    %p24 = pneg %p18
    %p25 = scmp.eq.s32.totalorder %s9, 1
    %p26 = por %p24, %p25
    %p27 = scmp.ne.s32.totalorder %s19, %s22
    %p28 = scmp.eq.s32.totalorder %s9, 0
    %p29 = por %p27, %p28
    %p30 = scmp.ne.s32.totalorder %s19, %s22
    %p31 = scmp.eq.s32.totalorder %s14, 1
    %p32 = por %p30, %p31
    %p33 = scmp.ne.s32.totalorder %s22, %s23
    %p34 = scmp.eq.s32.totalorder %s14, 0
    %p35 = por %p33, %p34
    %p36 = scmp.ne.s32.totalorder %s22, %s23
    %p37 = scmp.eq.s32.totalorder %s15, 1
    %p38 = por %p36, %p37
    %p40 = scmp.ne.s32.totalorder %s23, %s39
    %p41 = scmp.eq.s32.totalorder %s15, 0
    %p42 = por %p40, %p41
    %s44 = sadd.s32 %s43, 1
    %p47 = scmp.eq.s32.totalorder %s9, 1
    %p48 = scmp.ne.s32.totalorder %s43, %s45
    %p49 = scmp.eq.s32.totalorder %s9, 0
    %p50 = por %p48, %p49
    %p51 = scmp.ne.s32.totalorder %s43, %s45
    %p52 = scmp.eq.s32.totalorder %s14, 1
    %p53 = por %p51, %p52
    %p54 = scmp.ne.s32.totalorder %s45, %s46
    %p55 = scmp.eq.s32.totalorder %s14, 0
    %p56 = por %p54, %p55
    %p57 = scmp.ne.s32.totalorder %s45, %s46
    %p58 = scmp.eq.s32.totalorder %s15, 1
    %p59 = por %p57, %p58
    %p61 = scmp.ne.s32.totalorder %s46, %s60
    %p62 = scmp.eq.s32.totalorder %s15, 0
    %p63 = por %p61, %p62
    %s65 = sadd.s32 %s64, 1
    %p68 = scmp.eq.s32.totalorder %s9, 1
    %p69 = scmp.ne.s32.totalorder %s64, %s66
    %p70 = scmp.eq.s32.totalorder %s9, 0
    %p71 = por %p69, %p70
    %p72 = scmp.ne.s32.totalorder %s64, %s66
    %p73 = scmp.eq.s32.totalorder %s14, 1
    %p74 = por %p72, %p73
    %p75 = scmp.ne.s32.totalorder %s66, %s67
    %p76 = scmp.eq.s32.totalorder %s14, 0
    %p77 = por %p75, %p76
    %p78 = scmp.ne.s32.totalorder %s66, %s67
    %p79 = scmp.eq.s32.totalorder %s15, 1
    %p80 = por %p78, %p79
    %p82 = scmp.ne.s32.totalorder %s67, %s81
    %p83 = scmp.eq.s32.totalorder %s15, 0
    %p84 = por %p82, %p83
    %s85 = ssub.s32 %s9, %s16
    %p86 = scmp.eq.s32.totalorder %s85, 0
    %s88 = sadd.s32 %s87, 1
    %s89 = scalar_select %p86, %s87, %s88
    %p92 = pneg %p86
    %p93 = scmp.eq.s32.totalorder %s9, 1
    %p94 = por %p92, %p93
    %p95 = scmp.ne.s32.totalorder %s87, %s90
    %p96 = scmp.eq.s32.totalorder %s9, 0
    %p97 = por %p95, %p96
    %p98 = scmp.ne.s32.totalorder %s87, %s90
    %p99 = scmp.eq.s32.totalorder %s14, 1
    %p100 = por %p98, %p99
    %p101 = scmp.ne.s32.totalorder %s90, %s91
    %p102 = scmp.eq.s32.totalorder %s14, 0
    %p103 = por %p101, %p102
    %p104 = scmp.ne.s32.totalorder %s90, %s91
    %p105 = scmp.eq.s32.totalorder %s15, 1
    %p106 = por %p104, %p105
    %p108 = scmp.ne.s32.totalorder %s91, %s107
    %p109 = scmp.eq.s32.totalorder %s15, 0
    %p110 = por %p108, %p109
    %p111 = scmp.le.s32.totalorder 1, %s9
    %p112 = scmp.lt.s32.totalorder %s9, 3
    %p113 = pnand %p111, %p112
    %p114 = pneg %p113
    // Predicated region
    $region9: #{unet_innermost_block.5} parent=5 // pred_check
      _
    $region10: #{unet_innermost_block.5} parent=5 // pred_check_branch
      %116 = sbr.rel (%p113) target = $region12
    $region11: #{unet_innermost_block.5} parent=5 // pred_region
      %s117 = ssub.s32 %s9, 1
      // Predicated region
      $region13: #{unet_innermost_block.5} parent=11 // pred_check
        %p118 = pneg %p56
      $region14: #{unet_innermost_block.5} parent=11 // pred_check_branch
        %120 = sbr.rel (%p118) target = $region16
      $region15: #{unet_innermost_block.5} parent=11 // pred_region
        _
      $region16: #{unet_innermost_block.5} parent=11 // pred_fallthru
        _
      // Predicated region
      $region17: #{unet_innermost_block.5} parent=11 // pred_check
        %p121 = pneg %p77
      $region18: #{unet_innermost_block.5} parent=11 // pred_check_branch
        %123 = sbr.rel (%p121) target = $region20
      $region19: #{unet_innermost_block.5} parent=11 // pred_region
        _
      $region20: #{unet_innermost_block.5} parent=11 // pred_fallthru
        _
    $region12: #{unet_innermost_block.5} parent=5 // pred_fallthru
      _
    %p124 = scmp.lt.s32.totalorder %s9, 2
    // Predicated region
    $region21: #{unet_innermost_block.5} parent=5 // pred_check
      %p125 = pneg %p124
    $region22: #{unet_innermost_block.5} parent=5 // pred_check_branch
      %127 = sbr.rel (%p125) target = $region24
    $region23: #{unet_innermost_block.5} parent=5 // pred_region
      // Predicated region
      $region25: #{unet_innermost_block.5} parent=23 // pred_check
        %p128 = pneg %p29
      $region26: #{unet_innermost_block.5} parent=23 // pred_check_branch
        %130 = sbr.rel (%p128) target = $region28
      $region27: #{unet_innermost_block.5} parent=23 // pred_region
        %s131 = smul.u32 32, %s9
        %p132 = scmp.lt.s32.totalorder %s131, 63
        %s133 = scalar_select %p132, %s131, 63
        %s134 = smul.addr %s133, 8
        %s135 = scalar_lea.vmem %s0, %s134
        %s136 = smul.u32 32, %s9
      $region28: #{unet_innermost_block.5} parent=23 // pred_fallthru
        _
    $region24: #{unet_innermost_block.5} parent=5 // pred_fallthru
      _
    %p137 = scmp.le.s32.totalorder 1, %s9
    %p138 = scmp.lt.s32.totalorder %s9, 3
    %p139 = pnand %p137, %p138
    %p140 = pneg %p139
    // Predicated region
    $region29: #{unet_innermost_block.5} parent=5 // pred_check
      _
    $region30: #{unet_innermost_block.5} parent=5 // pred_check_branch
      %142 = sbr.rel (%p139) target = $region32
    $region31: #{unet_innermost_block.5} parent=5 // pred_region
      %s143 = ssub.s32 %s9, 1
      %s144 = smul.u32 32, %s14
      %p145 = scmp.lt.s32.totalorder %s144, 63
      %s146 = scalar_select %p145, %s144, 63
      %s147 = smul.addr %s146, 8
      %s148 = scalar_lea.vmem %s0, %s147
      %p149 = pneg %p35
      %p150 = pneg %p32
      %p151 = pneg %p56
      %p152 = pneg %p53
      %p153 = pneg %p77
      %p154 = pneg %p74
      %p155 = pneg %p103
      %p156 = pneg %p100
      %s157 = smul.u32 32, %s14
      %p158 = scmp.lt.s32.totalorder %s157, 63
      %s159 = scalar_select %p158, %s157, 63
      %s160 = smul.addr %s159, 8
      %s161 = scalar_lea.vmem %s3, %s160
      %s162 = smul.u32 32, %s14
      %p163 = scmp.lt.s32.totalorder %s162, 63
      %s164 = scalar_select %p163, %s162, 63
      %s165 = smul.addr %s164, 8
      %s166 = scalar_lea.vmem %s0, %s165
      %s167 = smul.u32 32, %s14
      %s168 = smul.u32 32, %s14
      %p169 = scmp.lt.s32.totalorder %s168, 63
      %s170 = scalar_select %p169, %s168, 63
      %s171 = smul.addr %s170, 8
      %s172 = scalar_lea.vmem %s3, %s171
      %s173 = smul.u32 32, %s14
      %v174 = vld [vmem:[%s166] sm:$0xff]
      %v175 = vld [vmem:[%s166 + $0x8] sm:$0xff]
      %v176 = vld [vmem:[%s166 + $0x10] sm:$0xff]
      %v177 = vld [vmem:[%s166 + $0x18] sm:$0xff]
      %v178 = vld [vmem:[%s166 + $0x20] sm:$0xff]
      %v179 = vld [vmem:[%s166 + $0x28] sm:$0xff]
      %v180 = vld [vmem:[%s166 + $0x30] sm:$0xff]
      %v181 = vld [vmem:[%s166 + $0x38] sm:$0xff]
      %v182 = vld [vmem:[%s166 + $0x40] sm:$0xff]
      %v183 = vld [vmem:[%s166 + $0x48] sm:$0xff]
      %v184 = vld [vmem:[%s166 + $0x50] sm:$0xff]
      %v185 = vld [vmem:[%s166 + $0x58] sm:$0xff]
      %v186 = vld [vmem:[%s166 + $0x60] sm:$0xff]
      %v187 = vld [vmem:[%s166 + $0x68] sm:$0xff]
      %v188 = vld [vmem:[%s166 + $0x70] sm:$0xff]
      %v189 = vld [vmem:[%s166 + $0x78] sm:$0xff]
      %v190 = vld [vmem:[%s166 + $0x80] sm:$0xff]
      %v191 = vld [vmem:[%s166 + $0x88] sm:$0xff]
      %v192 = vld [vmem:[%s166 + $0x90] sm:$0xff]
      %v193 = vld [vmem:[%s166 + $0x98] sm:$0xff]
      %v194 = vld [vmem:[%s166 + $0xa0] sm:$0xff]
      %v195 = vld [vmem:[%s166 + $0xa8] sm:$0xff]
      %v196 = vld [vmem:[%s166 + $0xb0] sm:$0xff]
      %v197 = vld [vmem:[%s166 + $0xb8] sm:$0xff]
      %v198 = vld [vmem:[%s166 + $0xc0] sm:$0xff]
      %v199 = vld [vmem:[%s166 + $0xc8] sm:$0xff]
      %v200 = vld [vmem:[%s166 + $0xd0] sm:$0xff]
      %v201 = vld [vmem:[%s166 + $0xd8] sm:$0xff]
      %v202 = vld [vmem:[%s166 + $0xe0] sm:$0xff]
      %v203 = vld [vmem:[%s166 + $0xe8] sm:$0xff]
      %v204 = vld [vmem:[%s166 + $0xf0] sm:$0xff]
      %v205 = vld [vmem:[%s166 + $0xf8] sm:$0xff]
      %v206 = vld [vmem:[%s1] sm:$0x1]
      %v208 = vlaneseq
      %v209 = vshrl.u32 %v208, 7
      %v210 = vsub.s32 0, %v209
      %v211 = vrot.slane %v206, %v210
      %v213 = vmul.f32 %v174, %v211
      %v214 = vmul.f32 %v175, %v211
      %v215 = vmul.f32 %v176, %v211
      %v216 = vmul.f32 %v177, %v211
      %v217 = vmul.f32 %v178, %v211
      %v218 = vmul.f32 %v179, %v211
      %v219 = vmul.f32 %v180, %v211
      %v220 = vmul.f32 %v181, %v211
      %v221 = vmul.f32 %v182, %v211
      %v222 = vmul.f32 %v183, %v211
      %v223 = vmul.f32 %v184, %v211
      %v224 = vmul.f32 %v185, %v211
      %v225 = vmul.f32 %v186, %v211
      %v226 = vmul.f32 %v187, %v211
      %v227 = vmul.f32 %v188, %v211
      %v228 = vmul.f32 %v189, %v211
      %v229 = vmul.f32 %v190, %v211
      %v230 = vmul.f32 %v191, %v211
      %v231 = vmul.f32 %v192, %v211
      %v232 = vmul.f32 %v193, %v211
      %v233 = vmul.f32 %v194, %v211
      %v234 = vmul.f32 %v195, %v211
      %v235 = vmul.f32 %v196, %v211
      %v236 = vmul.f32 %v197, %v211
      %v237 = vmul.f32 %v198, %v211
      %v238 = vmul.f32 %v199, %v211
      %v239 = vmul.f32 %v200, %v211
      %v240 = vmul.f32 %v201, %v211
      %v241 = vmul.f32 %v202, %v211
      %v242 = vmul.f32 %v203, %v211
      %v243 = vmul.f32 %v204, %v211
      %v244 = vmul.f32 %v205, %v211
      %v245 = vld [vmem:[%s2] sm:$0x1]
      %v247 = vlaneseq
      %v248 = vshrl.u32 %v247, 7
      %v249 = vsub.s32 0, %v248
      %v250 = vrot.slane %v245, %v249
      %v252 = vadd.f32 %v213, %v250
      %v253 = vadd.f32 %v214, %v250
      %v254 = vadd.f32 %v215, %v250
      %v255 = vadd.f32 %v216, %v250
      %v256 = vadd.f32 %v217, %v250
      %v257 = vadd.f32 %v218, %v250
      %v258 = vadd.f32 %v219, %v250
      %v259 = vadd.f32 %v220, %v250
      %v260 = vadd.f32 %v221, %v250
      %v261 = vadd.f32 %v222, %v250
      %v262 = vadd.f32 %v223, %v250
      %v263 = vadd.f32 %v224, %v250
      %v264 = vadd.f32 %v225, %v250
      %v265 = vadd.f32 %v226, %v250
      %v266 = vadd.f32 %v227, %v250
      %v267 = vadd.f32 %v228, %v250
      %v268 = vadd.f32 %v229, %v250
      %v269 = vadd.f32 %v230, %v250
      %v270 = vadd.f32 %v231, %v250
      %v271 = vadd.f32 %v232, %v250
      %v272 = vadd.f32 %v233, %v250
      %v273 = vadd.f32 %v234, %v250
      %v274 = vadd.f32 %v235, %v250
      %v275 = vadd.f32 %v236, %v250
      %v276 = vadd.f32 %v237, %v250
      %v277 = vadd.f32 %v238, %v250
      %v278 = vadd.f32 %v239, %v250
      %v279 = vadd.f32 %v240, %v250
      %v280 = vadd.f32 %v241, %v250
      %v281 = vadd.f32 %v242, %v250
      %v282 = vadd.f32 %v243, %v250
      %v283 = vadd.f32 %v244, %v250
      %vm284 = vcmask 31744
      %285 = vst.msk [vmem:[%s172] sm:$0xff] %vm284, %v252
      %286 = vst.msk [vmem:[%s172 + $0x8] sm:$0xff] %vm284, %v253
      %287 = vst.msk [vmem:[%s172 + $0x10] sm:$0xff] %vm284, %v254
      %288 = vst.msk [vmem:[%s172 + $0x18] sm:$0xff] %vm284, %v255
      %289 = vst.msk [vmem:[%s172 + $0x20] sm:$0xff] %vm284, %v256
      %290 = vst.msk [vmem:[%s172 + $0x28] sm:$0xff] %vm284, %v257
      %291 = vst.msk [vmem:[%s172 + $0x30] sm:$0xff] %vm284, %v258
      %292 = vst.msk [vmem:[%s172 + $0x38] sm:$0xff] %vm284, %v259
      %293 = vst.msk [vmem:[%s172 + $0x40] sm:$0xff] %vm284, %v260
      %294 = vst.msk [vmem:[%s172 + $0x48] sm:$0xff] %vm284, %v261
      %295 = vst.msk [vmem:[%s172 + $0x50] sm:$0xff] %vm284, %v262
      %296 = vst.msk [vmem:[%s172 + $0x58] sm:$0xff] %vm284, %v263
      %297 = vst.msk [vmem:[%s172 + $0x60] sm:$0xff] %vm284, %v264
      %298 = vst.msk [vmem:[%s172 + $0x68] sm:$0xff] %vm284, %v265
      %299 = vst.msk [vmem:[%s172 + $0x70] sm:$0xff] %vm284, %v266
      %300 = vst.msk [vmem:[%s172 + $0x78] sm:$0xff] %vm284, %v267
      %301 = vst.msk [vmem:[%s172 + $0x80] sm:$0xff] %vm284, %v268
      %302 = vst.msk [vmem:[%s172 + $0x88] sm:$0xff] %vm284, %v269
      %303 = vst.msk [vmem:[%s172 + $0x90] sm:$0xff] %vm284, %v270
      %304 = vst.msk [vmem:[%s172 + $0x98] sm:$0xff] %vm284, %v271
      %305 = vst.msk [vmem:[%s172 + $0xa0] sm:$0xff] %vm284, %v272
      %306 = vst.msk [vmem:[%s172 + $0xa8] sm:$0xff] %vm284, %v273
      %307 = vst.msk [vmem:[%s172 + $0xb0] sm:$0xff] %vm284, %v274
      %308 = vst.msk [vmem:[%s172 + $0xb8] sm:$0xff] %vm284, %v275
      %309 = vst.msk [vmem:[%s172 + $0xc0] sm:$0xff] %vm284, %v276
      %310 = vst.msk [vmem:[%s172 + $0xc8] sm:$0xff] %vm284, %v277
      %311 = vst.msk [vmem:[%s172 + $0xd0] sm:$0xff] %vm284, %v278
      %312 = vst.msk [vmem:[%s172 + $0xd8] sm:$0xff] %vm284, %v279
      %313 = vst.msk [vmem:[%s172 + $0xe0] sm:$0xff] %vm284, %v280
      %314 = vst.msk [vmem:[%s172 + $0xe8] sm:$0xff] %vm284, %v281
      %315 = vst.msk [vmem:[%s172 + $0xf0] sm:$0xff] %vm284, %v282
      %316 = vst.msk [vmem:[%s172 + $0xf8] sm:$0xff] %vm284, %v283
      %s317 = smul.u32 32, %s14
      %p318 = scmp.lt.s32.totalorder %s317, 63
      %s319 = scalar_select %p318, %s317, 63
      %s320 = smul.addr %s319, 8
      %s321 = scalar_lea.vmem %s3, %s320
      // Predicated region
      $region33: #{unet_innermost_block.5} parent=31 // pred_check
        %p322 = pneg %p100
      $region34: #{unet_innermost_block.5} parent=31 // pred_check_branch
        %324 = sbr.rel (%p322) target = $region36
      $region35: #{unet_innermost_block.5} parent=31 // pred_region
        %s325 = smul.u32 32, %s14
      $region36: #{unet_innermost_block.5} parent=31 // pred_fallthru
        _
    $region32: #{unet_innermost_block.5} parent=5 // pred_fallthru
      _
    %p326 = scmp.le.s32.totalorder 2, %s9
    // Predicated region
    $region37: #{unet_innermost_block.5} parent=5 // pred_check
      %p327 = pneg %p326
    $region38: #{unet_innermost_block.5} parent=5 // pred_check_branch
      %329 = sbr.rel (%p327) target = $region40
    $region39: #{unet_innermost_block.5} parent=5 // pred_region
      %s330 = ssub.s32 %s9, 2
      // Predicated region
      $region41: #{unet_innermost_block.5} parent=39 // pred_check
        %p331 = pneg %p106
      $region42: #{unet_innermost_block.5} parent=39 // pred_check_branch
        %333 = sbr.rel (%p331) target = $region44
      $region43: #{unet_innermost_block.5} parent=39 // pred_region
        %s334 = smul.u32 32, %s15
        %p335 = scmp.lt.s32.totalorder %s334, 63
        %s336 = scalar_select %p335, %s334, 63
        %s337 = smul.addr %s336, 8
        %s338 = scalar_lea.vmem %s3, %s337
      $region44: #{unet_innermost_block.5} parent=39 // pred_fallthru
        _
    $region40: #{unet_innermost_block.5} parent=5 // pred_fallthru
      _
  $region6: #{unet_innermost_block.5} parent=0 // loop_footer
    %s13 = sadd.s32 1, %s9
  $region7: #{unet_innermost_block.5} parent=0 // loop_footer_branch
    %8 = sbr.rel target = $region3
  $region8: #{unet_innermost_block.5} parent=0 // loop_exit
    _

// kernel: unet_innermost_block.4
$region0: #{unet_innermost_block.4}
  #allocation0 [shape = 'u32[]', space=smem, size = 0x4, offset = 0x4, fixed_abs, tag = 'smem constant byte address 0x4 - core index']
  #allocation1 [shape = 'u32[144,128]{1,0:T(1,128)}', space=vmem, size = 0x12000, scoped, tag = 'internal scratch']
  %s0 = inlined_call_operand.vmem [shape: f32[512,4], index: 0, kind: input, shape index: {}]
  %s1 = inlined_call_operand.vmem [shape: f32[1,4], index: 1, kind: output, shape index: {0}]
  %s2 = inlined_call_operand.vmem [shape: f32[1,4], index: 2, kind: output, shape index: {1}]
  %3 = xla_tuple %s1, %s2
  %s4 = sld [smem:[#allocation0]]
  $region49: #{unet_innermost_block.4} parent=0
    _
  %s6 = ssub.s32 1, %s4
  %s7 = scalar_select 0, %s6, %s4
  loop: start=0, step=1, limit=4
  $region2: #{unet_innermost_block.4} parent=0 // loop_pre_header
    _
  $region3: #{unet_innermost_block.4} parent=0 // loop_header
    %s9 = sphi 0, %s13
    %p10 = scmp.ge.s32.totalorder %s9, 4
    %s19 = sphi 0, %s21
    %s22 = sphi 0, %s19
    %s23 = sphi 0, %s22
    %s39 = sphi 0, %s23
    %s43 = sphi 0, %s43
    %s45 = sphi 0, %s43
    %s46 = sphi 0, %s45
    %s60 = sphi 0, %s46
    %s64 = sphi 0, %s64
    %s66 = sphi 0, %s64
    %s67 = sphi 0, %s66
    %s81 = sphi 0, %s67
  $region4: #{unet_innermost_block.4} parent=0 // loop_header_branch
    %12 = sbr.rel (%p10) target = $region8
  $region5: #{unet_innermost_block.4} parent=0 // loop_body
    %s14 = ssub.s32 %s9, 1
    %s15 = ssub.s32 %s9, 2
    %s16 = sadd.s32 %s9, 1
    %s17 = ssub.s32 %s9, %s16
    %p18 = scmp.eq.s32.totalorder %s17, 0
    %s20 = sadd.s32 %s19, 1
    %s21 = scalar_select %p18, %s19, %s20
    %p24 = pneg %p18
    %p25 = scmp.eq.s32.totalorder %s9, 1
    %p26 = por %p24, %p25
    %p27 = scmp.ne.s32.totalorder %s19, %s22
    %p28 = scmp.eq.s32.totalorder %s9, 0
    %p29 = por %p27, %p28
    %p30 = scmp.ne.s32.totalorder %s19, %s22
    %p31 = scmp.eq.s32.totalorder %s14, 1
    %p32 = por %p30, %p31
    %p33 = scmp.ne.s32.totalorder %s22, %s23
    %p34 = scmp.eq.s32.totalorder %s14, 0
    %p35 = por %p33, %p34
    %p36 = scmp.ne.s32.totalorder %s22, %s23
    %p37 = scmp.eq.s32.totalorder %s15, 1
    %p38 = por %p36, %p37
    %p40 = scmp.ne.s32.totalorder %s23, %s39
    %p41 = scmp.eq.s32.totalorder %s15, 0
    %p42 = por %p40, %p41
    %s44 = sadd.s32 %s43, 1
    %p47 = scmp.eq.s32.totalorder %s9, 1
    %p48 = scmp.ne.s32.totalorder %s43, %s45
    %p49 = scmp.eq.s32.totalorder %s9, 0
    %p50 = por %p48, %p49
    %p51 = scmp.ne.s32.totalorder %s43, %s45
    %p52 = scmp.eq.s32.totalorder %s14, 1
    %p53 = por %p51, %p52
    %p54 = scmp.ne.s32.totalorder %s45, %s46
    %p55 = scmp.eq.s32.totalorder %s14, 0
    %p56 = por %p54, %p55
    %p57 = scmp.ne.s32.totalorder %s45, %s46
    %p58 = scmp.eq.s32.totalorder %s15, 1
    %p59 = por %p57, %p58
    %p61 = scmp.ne.s32.totalorder %s46, %s60
    %p62 = scmp.eq.s32.totalorder %s15, 0
    %p63 = por %p61, %p62
    %s65 = sadd.s32 %s64, 1
    %p68 = scmp.eq.s32.totalorder %s9, 1
    %p69 = scmp.ne.s32.totalorder %s64, %s66
    %p70 = scmp.eq.s32.totalorder %s9, 0
    %p71 = por %p69, %p70
    %p72 = scmp.ne.s32.totalorder %s64, %s66
    %p73 = scmp.eq.s32.totalorder %s14, 1
    %p74 = por %p72, %p73
    %p75 = scmp.ne.s32.totalorder %s66, %s67
    %p76 = scmp.eq.s32.totalorder %s14, 0
    %p77 = por %p75, %p76
    %p78 = scmp.ne.s32.totalorder %s66, %s67
    %p79 = scmp.eq.s32.totalorder %s15, 1
    %p80 = por %p78, %p79
    %p82 = scmp.ne.s32.totalorder %s67, %s81
    %p83 = scmp.eq.s32.totalorder %s15, 0
    %p84 = por %p82, %p83
    %p85 = scmp.le.s32.totalorder 1, %s9
    %p86 = scmp.lt.s32.totalorder %s9, 3
    %p87 = pnand %p85, %p86
    %p88 = pneg %p87
    // Predicated region
    $region9: #{unet_innermost_block.4} parent=5 // pred_check
      _
    $region10: #{unet_innermost_block.4} parent=5 // pred_check_branch
      %90 = sbr.rel (%p87) target = $region12
    $region11: #{unet_innermost_block.4} parent=5 // pred_region
      %s91 = ssub.s32 %s9, 1
    $region12: #{unet_innermost_block.4} parent=5 // pred_fallthru
      _
    %p92 = scmp.lt.s32.totalorder %s9, 2
    // Predicated region
    $region13: #{unet_innermost_block.4} parent=5 // pred_check
      %p93 = pneg %p92
    $region14: #{unet_innermost_block.4} parent=5 // pred_check_branch
      %95 = sbr.rel (%p93) target = $region16
    $region15: #{unet_innermost_block.4} parent=5 // pred_region
      // Predicated region
      $region17: #{unet_innermost_block.4} parent=15 // pred_check
        %p96 = pneg %p29
      $region18: #{unet_innermost_block.4} parent=15 // pred_check_branch
        %98 = sbr.rel (%p96) target = $region20
      $region19: #{unet_innermost_block.4} parent=15 // pred_region
        %s99 = smul.u32 32, %s9
        %p100 = scmp.lt.s32.totalorder %s99, 63
        %s101 = scalar_select %p100, %s99, 63
        %s102 = smul.addr %s101, 8
        %s103 = scalar_lea.vmem %s0, %s102
        %s104 = smul.u32 32, %s9
      $region20: #{unet_innermost_block.4} parent=15 // pred_fallthru
        _
    $region16: #{unet_innermost_block.4} parent=5 // pred_fallthru
      _
    %p105 = scmp.le.s32.totalorder 1, %s9
    %p106 = scmp.lt.s32.totalorder %s9, 3
    %p107 = pnand %p105, %p106
    %p108 = pneg %p107
    // Predicated region
    $region21: #{unet_innermost_block.4} parent=5 // pred_check
      _
    $region22: #{unet_innermost_block.4} parent=5 // pred_check_branch
      %110 = sbr.rel (%p107) target = $region24
    $region23: #{unet_innermost_block.4} parent=5 // pred_region
      %s111 = ssub.s32 %s9, 1
      %s112 = smul.u32 32, %s14
      %p113 = scmp.lt.s32.totalorder %s112, 63
      %s114 = scalar_select %p113, %s112, 63
      %s115 = smul.addr %s114, 8
      %s116 = scalar_lea.vmem %s0, %s115
      %p117 = pneg %p35
      %p118 = pneg %p32
      %p119 = pneg %p56
      %p120 = pneg %p53
      %p121 = pneg %p77
      %p122 = pneg %p74
      %s123 = smul.u32 32, %s14
      %p124 = scmp.lt.s32.totalorder %s123, 63
      %s125 = scalar_select %p124, %s123, 63
      %s126 = smul.addr %s125, 8
      %s127 = scalar_lea.vmem %s0, %s126
      %s128 = smul.u32 32, %s14
      %p129 = scmp.eq.s32.totalorder %s14, 0
      // Predicated region
      $region25: #{unet_innermost_block.4} parent=23 // pred_check
        %p130 = pneg %p129
      $region26: #{unet_innermost_block.4} parent=23 // pred_check_branch
        %132 = sbr.rel (%p130) target = $region28
      $region27: #{unet_innermost_block.4} parent=23 // pred_region
        %vm133 = vcmask 24576
        %134 = vst.msk [vmem:[%s1] sm:$0x1] %vm133, 0.0
        %135 = vst.msk [vmem:[%s2] sm:$0x1] %vm133, 0.0
      $region28: #{unet_innermost_block.4} parent=23 // pred_fallthru
        _
      %v136 = vld [vmem:[%s127] sm:$0xff]
      %v137 = vld [vmem:[%s127 + $0x8] sm:$0xff]
      %v138 = vld [vmem:[%s127 + $0x10] sm:$0xff]
      %v139 = vld [vmem:[%s127 + $0x18] sm:$0xff]
      %v140 = vld [vmem:[%s127 + $0x20] sm:$0xff]
      %v141 = vld [vmem:[%s127 + $0x28] sm:$0xff]
      %v142 = vld [vmem:[%s127 + $0x30] sm:$0xff]
      %v143 = vld [vmem:[%s127 + $0x38] sm:$0xff]
      %v144 = vld [vmem:[%s127 + $0x40] sm:$0xff]
      %v145 = vld [vmem:[%s127 + $0x48] sm:$0xff]
      %v146 = vld [vmem:[%s127 + $0x50] sm:$0xff]
      %v147 = vld [vmem:[%s127 + $0x58] sm:$0xff]
      %v148 = vld [vmem:[%s127 + $0x60] sm:$0xff]
      %v149 = vld [vmem:[%s127 + $0x68] sm:$0xff]
      %v150 = vld [vmem:[%s127 + $0x70] sm:$0xff]
      %v151 = vld [vmem:[%s127 + $0x78] sm:$0xff]
      %v152 = vld [vmem:[%s127 + $0x80] sm:$0xff]
      %v153 = vld [vmem:[%s127 + $0x88] sm:$0xff]
      %v154 = vld [vmem:[%s127 + $0x90] sm:$0xff]
      %v155 = vld [vmem:[%s127 + $0x98] sm:$0xff]
      %v156 = vld [vmem:[%s127 + $0xa0] sm:$0xff]
      %v157 = vld [vmem:[%s127 + $0xa8] sm:$0xff]
      %v158 = vld [vmem:[%s127 + $0xb0] sm:$0xff]
      %v159 = vld [vmem:[%s127 + $0xb8] sm:$0xff]
      %v160 = vld [vmem:[%s127 + $0xc0] sm:$0xff]
      %v161 = vld [vmem:[%s127 + $0xc8] sm:$0xff]
      %v162 = vld [vmem:[%s127 + $0xd0] sm:$0xff]
      %v163 = vld [vmem:[%s127 + $0xd8] sm:$0xff]
      %v164 = vld [vmem:[%s127 + $0xe0] sm:$0xff]
      %v165 = vld [vmem:[%s127 + $0xe8] sm:$0xff]
      %v166 = vld [vmem:[%s127 + $0xf0] sm:$0xff]
      %v167 = vld [vmem:[%s127 + $0xf8] sm:$0xff]
      %v168 = vld [vmem:[%s1] sm:$0x1]
      %169 = vmatprep.subr.mxu0 0.0
      %170 = vmatpush1.msra.mxu0 %v136
      %171 = vmatprep.subr.mxu0 0.0
      %172 = vmatpush1.msra.mxu0 %v137
      %173 = vmatprep.subr.mxu0 0.0
      %174 = vmatpush1.msra.mxu0 %v138
      %175 = vmatprep.subr.mxu0 0.0
      %176 = vmatpush1.msra.mxu0 %v139
      %177 = vmatprep.subr.mxu0 0.0
      %178 = vmatpush1.msra.mxu0 %v140
      %179 = vmatprep.subr.mxu0 0.0
      %180 = vmatpush1.msra.mxu0 %v141
      %181 = vmatprep.subr.mxu0 0.0
      %182 = vmatpush1.msra.mxu0 %v142
      %183 = vmatprep.subr.mxu0 0.0
      %184 = vmatpush1.msra.mxu0 %v143
      %185 = vmatprep.subr.mxu0 0.0
      %186 = vmatpush1.msra.mxu0 %v144
      %187 = vmatprep.subr.mxu0 0.0
      %188 = vmatpush1.msra.mxu0 %v145
      %189 = vmatprep.subr.mxu0 0.0
      %190 = vmatpush1.msra.mxu0 %v146
      %191 = vmatprep.subr.mxu0 0.0
      %192 = vmatpush1.msra.mxu0 %v147
      %193 = vmatprep.subr.mxu0 0.0
      %194 = vmatpush1.msra.mxu0 %v148
      %195 = vmatprep.subr.mxu0 0.0
      %196 = vmatpush1.msra.mxu0 %v149
      %197 = vmatprep.subr.mxu0 0.0
      %198 = vmatpush1.msra.mxu0 %v150
      %199 = vmatprep.subr.mxu0 0.0
      %200 = vmatpush1.msra.mxu0 %v151
      %201 = vmatprep.subr.mxu0 0.0
      %202 = vmatpush1.msra.mxu0 %v152
      %203 = vmatprep.subr.mxu0 0.0
      %204 = vmatpush1.msra.mxu0 %v153
      %205 = vmatprep.subr.mxu0 0.0
      %206 = vmatpush1.msra.mxu0 %v154
      %207 = vmatprep.subr.mxu0 0.0
      %208 = vmatpush1.msra.mxu0 %v155
      %209 = vmatprep.subr.mxu0 0.0
      %210 = vmatpush1.msra.mxu0 %v156
      %211 = vmatprep.subr.mxu0 0.0
      %212 = vmatpush1.msra.mxu0 %v157
      %213 = vmatprep.subr.mxu0 0.0
      %214 = vmatpush1.msra.mxu0 %v158
      %215 = vmatprep.subr.mxu0 0.0
      %216 = vmatpush1.msra.mxu0 %v159
      %217 = vmatprep.subr.mxu0 0.0
      %218 = vmatpush1.msra.mxu0 %v160
      %219 = vmatprep.subr.mxu0 0.0
      %220 = vmatpush1.msra.mxu0 %v161
      %221 = vmatprep.subr.mxu0 0.0
      %222 = vmatpush1.msra.mxu0 %v162
      %223 = vmatprep.subr.mxu0 0.0
      %224 = vmatpush1.msra.mxu0 %v163
      %225 = vmatprep.subr.mxu0 0.0
      %226 = vmatpush1.msra.mxu0 %v164
      %227 = vmatprep.subr.mxu0 0.0
      %228 = vmatpush1.msra.mxu0 %v165
      %229 = vmatprep.subr.mxu0 0.0
      %230 = vmatpush1.msra.mxu0 %v166
      %231 = vmatprep.subr.mxu0 0.0
      %232 = vmatpush1.msra.mxu0 %v167
      %233 = vmatprep.mubr.f32.mxu0 1.0
      %234 = vmatmul.mubr.f32.gmra.mrb[0].mxu0 1.0
      %v235 = vpop.f32.mrb[0].mxu0
      %v236 = vadd.f32 0.0, %v235
      %v237 = vpop.f32.mrb[0].mxu0
      %238 = vdwg.mxu0
      %v239 = vadd.f32 %v168, %v236
      %vm240 = vcmask 24576
      %241 = vst.msk [vmem:[%s1] sm:$0x1] %vm240, %v239
      %v242 = vld [vmem:[%s2] sm:$0x1]
      %v243 = vmul.f32 %v136, %v136
      %v244 = vmul.f32 %v137, %v137
      %v245 = vmul.f32 %v138, %v138
      %v246 = vmul.f32 %v139, %v139
      %v247 = vmul.f32 %v140, %v140
      %v248 = vmul.f32 %v141, %v141
      %v249 = vmul.f32 %v142, %v142
      %v250 = vmul.f32 %v143, %v143
      %v251 = vmul.f32 %v144, %v144
      %v252 = vmul.f32 %v145, %v145
      %v253 = vmul.f32 %v146, %v146
      %v254 = vmul.f32 %v147, %v147
      %v255 = vmul.f32 %v148, %v148
      %v256 = vmul.f32 %v149, %v149
      %v257 = vmul.f32 %v150, %v150
      %v258 = vmul.f32 %v151, %v151
      %v259 = vmul.f32 %v152, %v152
      %v260 = vmul.f32 %v153, %v153
      %v261 = vmul.f32 %v154, %v154
      %v262 = vmul.f32 %v155, %v155
      %v263 = vmul.f32 %v156, %v156
      %v264 = vmul.f32 %v157, %v157
      %v265 = vmul.f32 %v158, %v158
      %v266 = vmul.f32 %v159, %v159
      %v267 = vmul.f32 %v160, %v160
      %v268 = vmul.f32 %v161, %v161
      %v269 = vmul.f32 %v162, %v162
      %v270 = vmul.f32 %v163, %v163
      %v271 = vmul.f32 %v164, %v164
      %v272 = vmul.f32 %v165, %v165
      %v273 = vmul.f32 %v166, %v166
      %v274 = vmul.f32 %v167, %v167
      %275 = vmatprep.subr.mxu0 0.0
      %276 = vmatpush1.msra.mxu0 %v243
      %277 = vmatprep.subr.mxu0 0.0
      %278 = vmatpush1.msra.mxu0 %v244
      %279 = vmatprep.subr.mxu0 0.0
      %280 = vmatpush1.msra.mxu0 %v245
      %281 = vmatprep.subr.mxu0 0.0
      %282 = vmatpush1.msra.mxu0 %v246
      %283 = vmatprep.subr.mxu0 0.0
      %284 = vmatpush1.msra.mxu0 %v247
      %285 = vmatprep.subr.mxu0 0.0
      %286 = vmatpush1.msra.mxu0 %v248
      %287 = vmatprep.subr.mxu0 0.0
      %288 = vmatpush1.msra.mxu0 %v249
      %289 = vmatprep.subr.mxu0 0.0
      %290 = vmatpush1.msra.mxu0 %v250
      %291 = vmatprep.subr.mxu0 0.0
      %292 = vmatpush1.msra.mxu0 %v251
      %293 = vmatprep.subr.mxu0 0.0
      %294 = vmatpush1.msra.mxu0 %v252
      %295 = vmatprep.subr.mxu0 0.0
      %296 = vmatpush1.msra.mxu0 %v253
      %297 = vmatprep.subr.mxu0 0.0
      %298 = vmatpush1.msra.mxu0 %v254
      %299 = vmatprep.subr.mxu0 0.0
      %300 = vmatpush1.msra.mxu0 %v255
      %301 = vmatprep.subr.mxu0 0.0
      %302 = vmatpush1.msra.mxu0 %v256
      %303 = vmatprep.subr.mxu0 0.0
      %304 = vmatpush1.msra.mxu0 %v257
      %305 = vmatprep.subr.mxu0 0.0
      %306 = vmatpush1.msra.mxu0 %v258
      %307 = vmatprep.subr.mxu0 0.0
      %308 = vmatpush1.msra.mxu0 %v259
      %309 = vmatprep.subr.mxu0 0.0
      %310 = vmatpush1.msra.mxu0 %v260
      %311 = vmatprep.subr.mxu0 0.0
      %312 = vmatpush1.msra.mxu0 %v261
      %313 = vmatprep.subr.mxu0 0.0
      %314 = vmatpush1.msra.mxu0 %v262
      %315 = vmatprep.subr.mxu0 0.0
      %316 = vmatpush1.msra.mxu0 %v263
      %317 = vmatprep.subr.mxu0 0.0
      %318 = vmatpush1.msra.mxu0 %v264
      %319 = vmatprep.subr.mxu0 0.0
      %320 = vmatpush1.msra.mxu0 %v265
      %321 = vmatprep.subr.mxu0 0.0
      %322 = vmatpush1.msra.mxu0 %v266
      %323 = vmatprep.subr.mxu0 0.0
      %324 = vmatpush1.msra.mxu0 %v267
      %325 = vmatprep.subr.mxu0 0.0
      %326 = vmatpush1.msra.mxu0 %v268
      %327 = vmatprep.subr.mxu0 0.0
      %328 = vmatpush1.msra.mxu0 %v269
      %329 = vmatprep.subr.mxu0 0.0
      %330 = vmatpush1.msra.mxu0 %v270
      %331 = vmatprep.subr.mxu0 0.0
      %332 = vmatpush1.msra.mxu0 %v271
      %333 = vmatprep.subr.mxu0 0.0
      %334 = vmatpush1.msra.mxu0 %v272
      %335 = vmatprep.subr.mxu0 0.0
      %336 = vmatpush1.msra.mxu0 %v273
      %337 = vmatprep.subr.mxu0 0.0
      %338 = vmatpush1.msra.mxu0 %v274
      %339 = vmatprep.mubr.f32.mxu0 1.0
      %340 = vmatmul.mubr.f32.gmra.mrb[0].mxu0 1.0
      %v341 = vpop.f32.mrb[0].mxu0
      %v342 = vadd.f32 0.0, %v341
      %v343 = vpop.f32.mrb[0].mxu0
      %344 = vdwg.mxu0
      %v345 = vadd.f32 %v242, %v342
      %346 = vst.msk [vmem:[%s2] sm:$0x1] %vm240, %v345
      // Predicated region
      $region29: #{unet_innermost_block.4} parent=23 // pred_check
        %p347 = pneg %p53
      $region30: #{unet_innermost_block.4} parent=23 // pred_check_branch
        %349 = sbr.rel (%p347) target = $region32
      $region31: #{unet_innermost_block.4} parent=23 // pred_region
        _
      $region32: #{unet_innermost_block.4} parent=23 // pred_fallthru
        _
      // Predicated region
      $region33: #{unet_innermost_block.4} parent=23 // pred_check
        %p350 = pneg %p74
      $region34: #{unet_innermost_block.4} parent=23 // pred_check_branch
        %352 = sbr.rel (%p350) target = $region36
      $region35: #{unet_innermost_block.4} parent=23 // pred_region
        _
      $region36: #{unet_innermost_block.4} parent=23 // pred_fallthru
        _
      // Predicated region
      $region37: #{unet_innermost_block.4} parent=23 // pred_check
        %p353 = pneg %p53
      $region38: #{unet_innermost_block.4} parent=23 // pred_check_branch
        %355 = sbr.rel (%p353) target = $region40
      $region39: #{unet_innermost_block.4} parent=23 // pred_region
        _
      $region40: #{unet_innermost_block.4} parent=23 // pred_fallthru
        _
      // Predicated region
      $region41: #{unet_innermost_block.4} parent=23 // pred_check
        %p356 = pneg %p74
      $region42: #{unet_innermost_block.4} parent=23 // pred_check_branch
        %358 = sbr.rel (%p356) target = $region44
      $region43: #{unet_innermost_block.4} parent=23 // pred_region
        _
      $region44: #{unet_innermost_block.4} parent=23 // pred_fallthru
        _
    $region24: #{unet_innermost_block.4} parent=5 // pred_fallthru
      _
    %p359 = scmp.le.s32.totalorder 2, %s9
    // Predicated region
    $region45: #{unet_innermost_block.4} parent=5 // pred_check
      %p360 = pneg %p359
    $region46: #{unet_innermost_block.4} parent=5 // pred_check_branch
      %362 = sbr.rel (%p360) target = $region48
    $region47: #{unet_innermost_block.4} parent=5 // pred_region
      %s363 = ssub.s32 %s9, 2
    $region48: #{unet_innermost_block.4} parent=5 // pred_fallthru
      _
  $region6: #{unet_innermost_block.4} parent=0 // loop_footer
    %s13 = sadd.s32 1, %s9
  $region7: #{unet_innermost_block.4} parent=0 // loop_footer_branch
    %8 = sbr.rel target = $region3
  $region8: #{unet_innermost_block.4} parent=0 // loop_exit
    _

</llo_original>
